<compile_context>
chip_gen: v6e
topology: v6e:2x2x1
jax: 0.10.0
libtpu: 0.0.40
codegen_flags: <defaults>
</compile_context>

<pallas_src>
import functools

import jax
import jax.numpy as jnp
from jax.experimental import pallas as pl
from jax.experimental.pallas import tpu as pltpu

LANE = 128   # TPU lane width (last dim)
SUB = 8      # TPU sublane width (second-last dim)

HIDDEN = [10, 10, 10]  # from A3C.build_nets h_states

CRIT = 64    # lane offset where the critic's features / value live
CONST = 127  # constant-1 lane used to fold biases into the matmuls

MAX_TILE_B = 512  # batch tile: double-buffered 512x128 f32 in+out tiles +
                  # 256 KB resident weights ~ 1.3 MB, safe on v5e/v6e/v7x VMEM


def _round_up(n, m):
    return ((n + m - 1) // m) * m


def _a3c_kernel(action_size, x_ref, w_ref, out_ref):
    # x_ref:  (tile_b, 128)  raw features in lanes 0..S-1, zeros elsewhere
    # w_ref:  (4, 128, 128)  fused block-diagonal weights (biases in row 127)
    # out_ref:(tile_b, 128)  probs in lanes 0..A-1, value in lane CRIT
    h = x_ref[...]

    # One iota, reused for the bias-lane injection AND the softmax mask
    # (JAX does not CSE broadcast_in_dim).
    lane_ids = jax.lax.broadcasted_iota(jnp.int32, h.shape, dimension=1)

    # Inject the constant-1 bias lane in-kernel (padding stays a single
    # wrapper-side jnp.pad).
    h = jnp.where(lane_ids == CONST, 1.0, h)

    # shared fc1, fused fc2(a|c), fused fc3(a|c): matmul + ReLU, bias folded in.
    for layer in range(3):
        h = jnp.maximum(
            jnp.dot(h, w_ref[layer], preferred_element_type=jnp.float32), 0.0)

    # fused output layer (no ReLU): logits in lanes 0..A-1, value in lane CRIT.
    y = jnp.dot(h, w_ref[3], preferred_element_type=jnp.float32)

    # softmax over the valid logit lanes only (value/pad lanes masked to -inf,
    # exp(-inf)=0 so they drop out of the sum).
    valid = lane_ids < action_size
    masked = jnp.where(valid, y, -jnp.inf)
    m = jnp.max(masked, axis=-1, keepdims=True)
    e = jnp.exp(masked - m)
    denom = jnp.sum(e, axis=-1, keepdims=True)
    probs = e * pl.reciprocal(denom, approx=False)

    # single lane-dense output tile: probs where valid, raw head output
    # (critic value in lane CRIT) elsewhere.
    out_ref[...] = jnp.where(valid, probs, y)


def prepare_params(params, state_size, action_size):
    """One-time packing of the 7 (W, b) pairs into a fused (4, 128, 128) tile.

    Layer 0: shared fc1             rows[:S]      -> cols[:H0]
    Layer 1: actor fc2 | critic fc2 rows[:H0]     -> cols[:H1] | cols[64:64+H1]
    Layer 2: actor fc3 | critic fc3 block-diag    -> cols[:H2] | cols[64:64+H2]
    Layer 3: actor out | critic out               -> cols[:A]  | col 64
    Biases live in row 127 (constant-1 lane); W[127,127]=1 propagates the 1.
    """
    (w1, b1), (w2a, b2a), (w3a, b3a), (woa, boa), \
        (w2c, b2c), (w3c, b3c), (woc, boc) = params
    H = HIDDEN
    assert state_size <= CONST - 1
    assert action_size <= CRIT
    assert max(H) <= CRIT - 1 and CRIT + max(H) <= CONST

    W = jnp.zeros((4, LANE, LANE), jnp.float32)

    # layer 0: shared fc1
    W = W.at[0, :state_size, :H[0]].set(w1)
    W = W.at[0, CONST, :H[0]].set(b1)
    W = W.at[0, CONST, CONST].set(1.0)

    # layer 1: fused fc2 (actor + critic both read shared h1 in lanes 0..H0-1)
    W = W.at[1, :H[0], :H[1]].set(w2a)
    W = W.at[1, :H[0], CRIT:CRIT + H[1]].set(w2c)
    W = W.at[1, CONST, :H[1]].set(b2a)
    W = W.at[1, CONST, CRIT:CRIT + H[1]].set(b2c)
    W = W.at[1, CONST, CONST].set(1.0)

    # layer 2: fused fc3 (block-diagonal)
    W = W.at[2, :H[1], :H[2]].set(w3a)
    W = W.at[2, CRIT:CRIT + H[1], CRIT:CRIT + H[2]].set(w3c)
    W = W.at[2, CONST, :H[2]].set(b3a)
    W = W.at[2, CONST, CRIT:CRIT + H[2]].set(b3c)
    W = W.at[2, CONST, CONST].set(1.0)

    # layer 3: fused output (logits + value)
    W = W.at[3, :H[2], :action_size].set(woa)
    W = W.at[3, CRIT:CRIT + H[2], CRIT:CRIT + 1].set(woc)
    W = W.at[3, CONST, :action_size].set(boa)
    W = W.at[3, CONST, CRIT].set(boc[0])
    return W


@functools.partial(jax.jit, static_argnames=("action_size",))
def a3c_forward(x, w_packed, action_size):
    """x: (B, state_size) f32.  w_packed: (4, 128, 128) from prepare_params.

    Returns (probs (B, action_size), value (B, 1))."""
    B, S = x.shape
    tile_b = min(MAX_TILE_B, _round_up(B, SUB))
    Bp = pl.cdiv(B, tile_b) * tile_b

    # single wrapper-side pad: batch -> Bp rows, features -> 128 lanes
    # (constant-1 bias lane is injected inside the kernel).
    xp = jnp.pad(x, ((0, Bp - B), (0, LANE - S)))

    out = pl.pallas_call(
        functools.partial(_a3c_kernel, action_size),
        out_shape=jax.ShapeDtypeStruct((Bp, LANE), jnp.float32),
        grid=(Bp // tile_b,),
        in_specs=[
            pl.BlockSpec((tile_b, LANE), lambda i: (i, 0)),
            # constant block index -> fused weights stay VMEM-resident
            pl.BlockSpec((4, LANE, LANE), lambda i: (0, 0, 0)),
        ],
        out_specs=pl.BlockSpec((tile_b, LANE), lambda i: (i, 0)),
        compiler_params=pltpu.CompilerParams(
            dimension_semantics=("parallel",)),
    )(xp, w_packed)

    return out[:B, :action_size], out[:B, CRIT:CRIT + 1]


def init_params(key, state_size, action_size):
    """Deterministic init mirroring torch.nn.Linear default U(-1/sqrt(fan_in), ...)."""
    shapes = [
        (state_size, HIDDEN[0]),   # shared fc1
        (HIDDEN[0], HIDDEN[1]),    # actor fc2
        (HIDDEN[1], HIDDEN[2]),    # actor fc3
        (HIDDEN[2], action_size),  # actor out (logits)
        (HIDDEN[0], HIDDEN[1]),    # critic fc2
        (HIDDEN[1], HIDDEN[2]),    # critic fc3
        (HIDDEN[2], 1),            # critic out (value)
    ]
    params = []
    for (fan_in, fan_out) in shapes:
        key, kw, kb = jax.random.split(key, 3)
        bound = 1.0 / jnp.sqrt(jnp.float32(fan_in))
        w = jax.random.uniform(kw, (fan_in, fan_out), jnp.float32, -bound, bound)
        b = jax.random.uniform(kb, (fan_out,), jnp.float32, -bound, bound)
        params.append((w, b))
    return params


def reference_forward(x, params, action_size):
    (w1, b1), (w2a, b2a), (w3a, b3a), (woa, boa), \
        (w2c, b2c), (w3c, b3c), (woc, boc) = params
    relu = lambda v: jnp.maximum(v, 0.0)
    h1 = relu(x @ w1 + b1)
    ha = relu(relu(h1 @ w2a + b2a) @ w3a + b3a)
    logits = ha @ woa + boa
    probs = jax.nn.softmax(logits, axis=-1)
    hc = relu(relu(h1 @ w2c + b2c) @ w3c + b3c)
    value = hc @ woc + boc
    return probs, value


if __name__ == "__main__":
    state_size = 4
    action_size = 2
    batch = 2

    key = jax.random.PRNGKey(0)
    key, kx = jax.random.split(key)
    x = jax.random.normal(kx, (batch, state_size), jnp.float32)
    params = init_params(key, state_size, action_size)

    # one-time weight packing (hoisted out of the per-call path)
    w_packed = prepare_params(params, state_size, action_size)

    probs, value = a3c_forward(x, w_packed, action_size)
    jax.block_until_ready((probs, value))

    probs_ref, value_ref = reference_forward(x, params, action_size)
    assert probs.shape == (batch, action_size)
    assert value.shape == (batch, 1)
    assert jnp.allclose(probs, probs_ref, atol=1e-5, rtol=1e-5)
    assert jnp.allclose(value, value_ref, atol=1e-5, rtol=1e-5)

    # secondary check: exercise the multi-tile batch grid + partial-tile pad
    batch2 = 520
    key, kx2 = jax.random.split(key)
    x2 = jax.random.normal(kx2, (batch2, state_size), jnp.float32)
    probs2, value2 = a3c_forward(x2, w_packed, action_size)
    jax.block_until_ready((probs2, value2))
    probs2_ref, value2_ref = reference_forward(x2, params, action_size)
    assert jnp.allclose(probs2, probs2_ref, atol=1e-5, rtol=1e-5)
    assert jnp.allclose(value2, value2_ref, atol=1e-5, rtol=1e-5)

    # TODO(synk): A3C.forward is unimplemented (`...`) upstream; the training
    # loop, Adam optimizers, worker threads, and checkpoint I/O have no Pallas
    # equivalent — only the actor+critic inference path is implemented here.
    print("KERNEL_OK")
</pallas_src>

<mosaic_0001>
module attributes {stable_mosaic.version = 11 : i64} {
  func.func @_a3c_kernel(%arg0: i32, %arg1: memref<8x128xf32, #tpu.memory_space<vmem>>, %arg2: memref<4x128x128xf32, #tpu.memory_space<vmem>>, %arg3: memref<8x128xf32, #tpu.memory_space<vmem>>) attributes {dimension_semantics = [#tpu.dimension_semantics<parallel>], iteration_bounds = array<i64: 1>, scalar_prefetch = 0 : i64, scratch_operands = 0 : i64, tpu.core_type = #tpu.core_type<tc>, window_params = [{transform_indices = @transform_0, window_bounds = array<i64: 8, 128>}, {pipeline_mode = #tpu.pipeline_mode<synchronous>, transform_indices = @transform_1, window_bounds = array<i64: 4, 128, 128>}, {transform_indices = @transform_2, window_bounds = array<i64: 8, 128>}]} {
    %c0 = arith.constant 0 : index
    %c0_0 = arith.constant 0 : index
    %0 = vector.load %arg1[%c0, %c0_0] : memref<8x128xf32, #tpu.memory_space<vmem>>, vector<8x128xf32>
    %1 = tpu.iota {dimensions = array<i32: 1>} : vector<8x128xi32>
    %c127_i32 = arith.constant 127 : i32
    %2 = vector.broadcast %c127_i32 : i32 to vector<8x128xi32>
    %3 = arith.cmpi eq, %1, %2 : vector<8x128xi32>
    %cst = arith.constant 1.000000e+00 : f32
    %4 = vector.broadcast %cst : f32 to vector<8x128xf32>
    %5 = arith.select %3, %4, %0 : vector<8x128xi1>, vector<8x128xf32>
    %c0_1 = arith.constant 0 : index
    %c0_2 = arith.constant 0 : index
    %c0_3 = arith.constant 0 : index
    %6 = vector.load %arg2[%c0_1, %c0_2, %c0_3] : memref<4x128x128xf32, #tpu.memory_space<vmem>>, vector<1x128x128xf32>
    %7 = vector.shape_cast %6 : vector<1x128x128xf32> to vector<128x128xf32>
    %cst_4 = arith.constant dense<0.000000e+00> : vector<8x128xf32>
    %8 = tpu.matmul %5, %7, %cst_4 {dimension_numbers = #tpu.dot_dimension_numbers<[1], [0], [0], [1], [0, 0, 1, 1], [], []>} : vector<8x128xf32>, vector<128x128xf32>, vector<8x128xf32> -> vector<8x128xf32>
    %cst_5 = arith.constant 0.000000e+00 : f32
    %9 = vector.broadcast %cst_5 : f32 to vector<8x128xf32>
    %10 = arith.maximumf %8, %9 : vector<8x128xf32>
    %c1 = arith.constant 1 : index
    %c0_6 = arith.constant 0 : index
    %c0_7 = arith.constant 0 : index
    %11 = vector.load %arg2[%c1, %c0_6, %c0_7] : memref<4x128x128xf32, #tpu.memory_space<vmem>>, vector<1x128x128xf32>
    %12 = vector.shape_cast %11 : vector<1x128x128xf32> to vector<128x128xf32>
    %cst_8 = arith.constant dense<0.000000e+00> : vector<8x128xf32>
    %13 = tpu.matmul %10, %12, %cst_8 {dimension_numbers = #tpu.dot_dimension_numbers<[1], [0], [0], [1], [0, 0, 1, 1], [], []>} : vector<8x128xf32>, vector<128x128xf32>, vector<8x128xf32> -> vector<8x128xf32>
    %cst_9 = arith.constant 0.000000e+00 : f32
    %14 = vector.broadcast %cst_9 : f32 to vector<8x128xf32>
    %15 = arith.maximumf %13, %14 : vector<8x128xf32>
    %c2 = arith.constant 2 : index
    %c0_10 = arith.constant 0 : index
    %c0_11 = arith.constant 0 : index
    %16 = vector.load %arg2[%c2, %c0_10, %c0_11] : memref<4x128x128xf32, #tpu.memory_space<vmem>>, vector<1x128x128xf32>
    %17 = vector.shape_cast %16 : vector<1x128x128xf32> to vector<128x128xf32>
    %cst_12 = arith.constant dense<0.000000e+00> : vector<8x128xf32>
    %18 = tpu.matmul %15, %17, %cst_12 {dimension_numbers = #tpu.dot_dimension_numbers<[1], [0], [0], [1], [0, 0, 1, 1], [], []>} : vector<8x128xf32>, vector<128x128xf32>, vector<8x128xf32> -> vector<8x128xf32>
    %cst_13 = arith.constant 0.000000e+00 : f32
    %19 = vector.broadcast %cst_13 : f32 to vector<8x128xf32>
    %20 = arith.maximumf %18, %19 : vector<8x128xf32>
    %c3 = arith.constant 3 : index
    %c0_14 = arith.constant 0 : index
    %c0_15 = arith.constant 0 : index
    %21 = vector.load %arg2[%c3, %c0_14, %c0_15] : memref<4x128x128xf32, #tpu.memory_space<vmem>>, vector<1x128x128xf32>
    %22 = vector.shape_cast %21 : vector<1x128x128xf32> to vector<128x128xf32>
    %cst_16 = arith.constant dense<0.000000e+00> : vector<8x128xf32>
    %23 = tpu.matmul %20, %22, %cst_16 {dimension_numbers = #tpu.dot_dimension_numbers<[1], [0], [0], [1], [0, 0, 1, 1], [], []>} : vector<8x128xf32>, vector<128x128xf32>, vector<8x128xf32> -> vector<8x128xf32>
    %c2_i32 = arith.constant 2 : i32
    %24 = vector.broadcast %c2_i32 : i32 to vector<8x128xi32>
    %25 = arith.cmpi slt, %1, %24 : vector<8x128xi32>
    %cst_17 = arith.constant 0xFF800000 : f32
    %26 = vector.broadcast %cst_17 : f32 to vector<8x128xf32>
    %27 = arith.select %25, %23, %26 : vector<8x128xi1>, vector<8x128xf32>
    %cst_18 = arith.constant dense<0xFF800000> : vector<8xf32>
    %28 = vector.multi_reduction <maximumf>, %27, %cst_18 [1] : vector<8x128xf32> to vector<8xf32>
    %29 = vector.shape_cast %28 : vector<8xf32> to vector<8x1xf32>
    %30 = vector.broadcast %29 : vector<8x1xf32> to vector<8x128xf32>
    %31 = arith.subf %27, %30 : vector<8x128xf32>
    %32 = math.exp %31 : vector<8x128xf32>
    %cst_19 = arith.constant dense<0.000000e+00> : vector<8xf32>
    %33 = vector.multi_reduction <add>, %32, %cst_19 [1] : vector<8x128xf32> to vector<8xf32>
    %34 = vector.shape_cast %33 : vector<8xf32> to vector<8x1xf32>
    %35 = tpu.reciprocal %34 : vector<8x1xf32> -> vector<8x1xf32>
    %36 = vector.broadcast %35 : vector<8x1xf32> to vector<8x128xf32>
    %37 = arith.mulf %32, %36 : vector<8x128xf32>
    %38 = arith.select %25, %37, %23 : vector<8x128xi1>, vector<8x128xf32>
    %c0_20 = arith.constant 0 : index
    %c0_21 = arith.constant 0 : index
    %39 = vector.load %arg3[%c0_20, %c0_21] : memref<8x128xf32, #tpu.memory_space<vmem>>, vector<8x128xf32>
    tpu.vector_store %arg3[%c0_20, %c0_21], %38 {strides = array<i32>} : memref<8x128xf32, #tpu.memory_space<vmem>>, vector<8x128xf32>,
    return
  }
  func.func @transform_0(%arg0: i32) -> (i32, i32) {
    %c0_i32 = arith.constant 0 : i32
    %c0_i32_0 = arith.constant 0 : i32
    return %arg0, %c0_i32 : i32, i32
  }
  func.func @transform_1(%arg0: i32) -> (i32, i32, i32) {
    %c0_i32 = arith.constant 0 : i32
    %c0_i32_0 = arith.constant 0 : i32
    %c0_i32_1 = arith.constant 0 : i32
    %c0_i32_2 = arith.constant 0 : i32
    return %c0_i32, %c0_i32_0, %c0_i32_1 : i32, i32, i32
  }
  func.func @transform_2(%arg0: i32) -> (i32, i32) {
    %c0_i32 = arith.constant 0 : i32
    %c0_i32_0 = arith.constant 0 : i32
    return %arg0, %c0_i32 : i32, i32
  }
}

</mosaic_0001>

<llo_original>
// kernel: a3c_forward.1
$region0: #{a3c_forward.1}
  #allocation0 [shape = 'u32[]', space=smem, size = 0x4, offset = 0x4, fixed_abs, tag = 'smem constant byte address 0x4 - core index']
  #allocation1 [shape = 'u32[144,128]{1,0:T(1,128)}', space=vmem, size = 0x12000, scoped, tag = 'internal scratch']
  %s0 = inlined_call_operand.vmem [shape: f32[8,128], index: 0, kind: input, shape index: {}]
  %s1 = inlined_call_operand.hbm [shape: f32[4,128,128], index: 1, kind: input, shape index: {}]
  %s2 = inlined_call_operand.vmem [shape: f32[8,128], index: 2, kind: output, shape index: {}]
  %s3 = sld [smem:[#allocation0]]
  $region22: #{a3c_forward.1} parent=0
    _
  %s5 = ssub.s32 1, %s3
  %s6 = scalar_select 0, %s5, %s3
  $region1: #{a3c_forward.1} parent=0
    #allocation2 [shape = 'u8[262144]{0}', space=vmem, size = 0x40000, scoped, tag = 'input window, operand 1, single buffered']
    #allocation3 [shape = 's32[1]{0}', space=sflag, size = 0x4, scoped, tag = 'scoped memory for a3c_forward.1']
    %7 = vsyncpa [#allocation3], 0
    // Predicated region
    $region2: #{a3c_forward.1} parent=1 // pred_check
      _
    $region3: #{a3c_forward.1} parent=1 // pred_check_branch
      %9 = sbr.rel (0) target = $region5
    $region4: #{a3c_forward.1} parent=1 // pred_region
      _
    $region5: #{a3c_forward.1} parent=1 // pred_fallthru
      _
    // Predicated region
    $region6: #{a3c_forward.1} parent=1 // pred_check
      _
    $region7: #{a3c_forward.1} parent=1 // pred_check_branch
      %11 = sbr.rel (0) target = $region9
    $region8: #{a3c_forward.1} parent=1 // pred_region
      %s13 = ssub.s32 8192, 8192
      %14 = vsyncadd [#allocation3], %s13
      %s15 = sshll.u32 [#allocation2], 4
      %s16 = int_to_ptr.vmem [resolvable:$true] %s15
      %21 = dma.hbm_to_vmem [thread:$0]  %s1, 8192, %s16, [#allocation3], 128, 128, 8
    $region9: #{a3c_forward.1} parent=1 // pred_fallthru
      _
    // Predicated region
    $region10: #{a3c_forward.1} parent=1 // pred_check
      _
    $region11: #{a3c_forward.1} parent=1 // pred_check_branch
      %23 = sbr.rel (0) target = $region13
    $region12: #{a3c_forward.1} parent=1 // pred_region
      %24 = dma.done [#allocation3], 8192
    $region13: #{a3c_forward.1} parent=1 // pred_fallthru
      _
    %v25 = vld [vmem:[%s0] sm:$0xff]
    %v26 = vlaneseq
    %v27 = vand.u32 %v26, 127
    %vm28 = vcmp.eq.s32.totalorder %v27, 127
    %v29 = vsel %vm28, 1.0, %v25
    %v30 = vld [vmem:[#allocation2] sm:$0xff]
    %v31 = vld [vmem:[#allocation2 + $0x8] sm:$0xff]
    %v32 = vld [vmem:[#allocation2 + $0x10] sm:$0xff]
    %v33 = vld [vmem:[#allocation2 + $0x18] sm:$0xff]
    %v34 = vld [vmem:[#allocation2 + $0x20] sm:$0xff]
    %v35 = vld [vmem:[#allocation2 + $0x28] sm:$0xff]
    %v36 = vld [vmem:[#allocation2 + $0x30] sm:$0xff]
    %v37 = vld [vmem:[#allocation2 + $0x38] sm:$0xff]
    %v38 = vld [vmem:[#allocation2 + $0x40] sm:$0xff]
    %v39 = vld [vmem:[#allocation2 + $0x48] sm:$0xff]
    %v40 = vld [vmem:[#allocation2 + $0x50] sm:$0xff]
    %v41 = vld [vmem:[#allocation2 + $0x58] sm:$0xff]
    %v42 = vld [vmem:[#allocation2 + $0x60] sm:$0xff]
    %v43 = vld [vmem:[#allocation2 + $0x68] sm:$0xff]
    %v44 = vld [vmem:[#allocation2 + $0x70] sm:$0xff]
    %v45 = vld [vmem:[#allocation2 + $0x78] sm:$0xff]
    %46 = vmatprep.subr.mxu0 0.0
    %47 = vmatpush1.msra.mxu0 %v45
    %48 = vmatprep.subr.mxu0 0.0
    %49 = vmatpush1.msra.mxu0 %v44
    %50 = vmatprep.subr.mxu0 0.0
    %51 = vmatpush1.msra.mxu0 %v43
    %52 = vmatprep.subr.mxu0 0.0
    %53 = vmatpush1.msra.mxu0 %v42
    %54 = vmatprep.subr.mxu0 0.0
    %55 = vmatpush1.msra.mxu0 %v41
    %56 = vmatprep.subr.mxu0 0.0
    %57 = vmatpush1.msra.mxu0 %v40
    %58 = vmatprep.subr.mxu0 0.0
    %59 = vmatpush1.msra.mxu0 %v39
    %60 = vmatprep.subr.mxu0 0.0
    %61 = vmatpush1.msra.mxu0 %v38
    %62 = vmatprep.subr.mxu0 0.0
    %63 = vmatpush1.msra.mxu0 %v37
    %64 = vmatprep.subr.mxu0 0.0
    %65 = vmatpush1.msra.mxu0 %v36
    %66 = vmatprep.subr.mxu0 0.0
    %67 = vmatpush1.msra.mxu0 %v35
    %68 = vmatprep.subr.mxu0 0.0
    %69 = vmatpush1.msra.mxu0 %v34
    %70 = vmatprep.subr.mxu0 0.0
    %71 = vmatpush1.msra.mxu0 %v33
    %72 = vmatprep.subr.mxu0 0.0
    %73 = vmatpush1.msra.mxu0 %v32
    %74 = vmatprep.subr.mxu0 0.0
    %75 = vmatpush1.msra.mxu0 %v31
    %76 = vmatprep.subr.mxu0 0.0
    %77 = vmatpush1.msra.mxu0 %v30
    %78 = vmatprep.subr.mxu0 0.0
    %79 = vmatpush2.msra.mxu0 0.0
    %80 = vmatprep.subr.mxu0 0.0
    %81 = vmatpush2.msra.mxu0 0.0
    %82 = vmatprep.subr.mxu0 0.0
    %83 = vmatpush2.msra.mxu0 0.0
    %84 = vmatprep.subr.mxu0 0.0
    %85 = vmatpush2.msra.mxu0 0.0
    %86 = vmatprep.subr.mxu0 0.0
    %87 = vmatpush2.msra.mxu0 0.0
    %88 = vmatprep.subr.mxu0 0.0
    %89 = vmatpush2.msra.mxu0 0.0
    %90 = vmatprep.subr.mxu0 0.0
    %91 = vmatpush2.msra.mxu0 0.0
    %92 = vmatprep.subr.mxu0 0.0
    %93 = vmatpush2.msra.mxu0 0.0
    %94 = vmatprep.subr.mxu0 0.0
    %95 = vmatpush2.msra.mxu0 0.0
    %96 = vmatprep.subr.mxu0 0.0
    %97 = vmatpush2.msra.mxu0 0.0
    %98 = vmatprep.subr.mxu0 0.0
    %99 = vmatpush2.msra.mxu0 0.0
    %100 = vmatprep.subr.mxu0 0.0
    %101 = vmatpush2.msra.mxu0 0.0
    %102 = vmatprep.subr.mxu0 0.0
    %103 = vmatpush2.msra.mxu0 0.0
    %104 = vmatprep.subr.mxu0 0.0
    %105 = vmatpush2.msra.mxu0 0.0
    %106 = vmatprep.subr.mxu0 0.0
    %107 = vmatpush2.msra.mxu0 0.0
    %108 = vmatprep.subr.mxu0 0.0
    %109 = vmatpush2.msra.mxu0 0.0
    %110 = vmatprep.mubr.f32.mxu0 0.0
    %111 = vmatmul.mubr.f32.gmra.mxu0 %v29
    %v112 = vpop.f32.mrf.mxu0
    %v113 = vadd.f32 0.0, %v112
    %v114 = vpop.f32.mrf.mxu0
    %115 = vdwg.mxu0
    %v116 = vmax.f32 %v113, 0.0
    %s117 = scalar_lea.vmem [#allocation2], 128
    %v118 = vld [vmem:[%s117] sm:$0xff]
    %v119 = vld [vmem:[%s117 + $0x8] sm:$0xff]
    %v120 = vld [vmem:[%s117 + $0x10] sm:$0xff]
    %v121 = vld [vmem:[%s117 + $0x18] sm:$0xff]
    %v122 = vld [vmem:[%s117 + $0x20] sm:$0xff]
    %v123 = vld [vmem:[%s117 + $0x28] sm:$0xff]
    %v124 = vld [vmem:[%s117 + $0x30] sm:$0xff]
    %v125 = vld [vmem:[%s117 + $0x38] sm:$0xff]
    %v126 = vld [vmem:[%s117 + $0x40] sm:$0xff]
    %v127 = vld [vmem:[%s117 + $0x48] sm:$0xff]
    %v128 = vld [vmem:[%s117 + $0x50] sm:$0xff]
    %v129 = vld [vmem:[%s117 + $0x58] sm:$0xff]
    %v130 = vld [vmem:[%s117 + $0x60] sm:$0xff]
    %v131 = vld [vmem:[%s117 + $0x68] sm:$0xff]
    %v132 = vld [vmem:[%s117 + $0x70] sm:$0xff]
    %v133 = vld [vmem:[%s117 + $0x78] sm:$0xff]
    %134 = vmatprep.subr.mxu0 0.0
    %135 = vmatpush1.msra.mxu0 %v133
    %136 = vmatprep.subr.mxu0 0.0
    %137 = vmatpush1.msra.mxu0 %v132
    %138 = vmatprep.subr.mxu0 0.0
    %139 = vmatpush1.msra.mxu0 %v131
    %140 = vmatprep.subr.mxu0 0.0
    %141 = vmatpush1.msra.mxu0 %v130
    %142 = vmatprep.subr.mxu0 0.0
    %143 = vmatpush1.msra.mxu0 %v129
    %144 = vmatprep.subr.mxu0 0.0
    %145 = vmatpush1.msra.mxu0 %v128
    %146 = vmatprep.subr.mxu0 0.0
    %147 = vmatpush1.msra.mxu0 %v127
    %148 = vmatprep.subr.mxu0 0.0
    %149 = vmatpush1.msra.mxu0 %v126
    %150 = vmatprep.subr.mxu0 0.0
    %151 = vmatpush1.msra.mxu0 %v125
    %152 = vmatprep.subr.mxu0 0.0
    %153 = vmatpush1.msra.mxu0 %v124
    %154 = vmatprep.subr.mxu0 0.0
    %155 = vmatpush1.msra.mxu0 %v123
    %156 = vmatprep.subr.mxu0 0.0
    %157 = vmatpush1.msra.mxu0 %v122
    %158 = vmatprep.subr.mxu0 0.0
    %159 = vmatpush1.msra.mxu0 %v121
    %160 = vmatprep.subr.mxu0 0.0
    %161 = vmatpush1.msra.mxu0 %v120
    %162 = vmatprep.subr.mxu0 0.0
    %163 = vmatpush1.msra.mxu0 %v119
    %164 = vmatprep.subr.mxu0 0.0
    %165 = vmatpush1.msra.mxu0 %v118
    %166 = vmatprep.subr.mxu0 0.0
    %167 = vmatpush2.msra.mxu0 0.0
    %168 = vmatprep.subr.mxu0 0.0
    %169 = vmatpush2.msra.mxu0 0.0
    %170 = vmatprep.subr.mxu0 0.0
    %171 = vmatpush2.msra.mxu0 0.0
    %172 = vmatprep.subr.mxu0 0.0
    %173 = vmatpush2.msra.mxu0 0.0
    %174 = vmatprep.subr.mxu0 0.0
    %175 = vmatpush2.msra.mxu0 0.0
    %176 = vmatprep.subr.mxu0 0.0
    %177 = vmatpush2.msra.mxu0 0.0
    %178 = vmatprep.subr.mxu0 0.0
    %179 = vmatpush2.msra.mxu0 0.0
    %180 = vmatprep.subr.mxu0 0.0
    %181 = vmatpush2.msra.mxu0 0.0
    %182 = vmatprep.subr.mxu0 0.0
    %183 = vmatpush2.msra.mxu0 0.0
    %184 = vmatprep.subr.mxu0 0.0
    %185 = vmatpush2.msra.mxu0 0.0
    %186 = vmatprep.subr.mxu0 0.0
    %187 = vmatpush2.msra.mxu0 0.0
    %188 = vmatprep.subr.mxu0 0.0
    %189 = vmatpush2.msra.mxu0 0.0
    %190 = vmatprep.subr.mxu0 0.0
    %191 = vmatpush2.msra.mxu0 0.0
    %192 = vmatprep.subr.mxu0 0.0
    %193 = vmatpush2.msra.mxu0 0.0
    %194 = vmatprep.subr.mxu0 0.0
    %195 = vmatpush2.msra.mxu0 0.0
    %196 = vmatprep.subr.mxu0 0.0
    %197 = vmatpush2.msra.mxu0 0.0
    %198 = vmatprep.mubr.f32.mxu0 0.0
    %199 = vmatmul.mubr.f32.gmra.mxu0 %v116
    %v200 = vpop.f32.mrf.mxu0
    %v201 = vadd.f32 0.0, %v200
    %v202 = vpop.f32.mrf.mxu0
    %203 = vdwg.mxu0
    %v204 = vmax.f32 %v201, 0.0
    %s205 = scalar_lea.vmem [#allocation2], 256
    %v206 = vld [vmem:[%s205] sm:$0xff]
    %v207 = vld [vmem:[%s205 + $0x8] sm:$0xff]
    %v208 = vld [vmem:[%s205 + $0x10] sm:$0xff]
    %v209 = vld [vmem:[%s205 + $0x18] sm:$0xff]
    %v210 = vld [vmem:[%s205 + $0x20] sm:$0xff]
    %v211 = vld [vmem:[%s205 + $0x28] sm:$0xff]
    %v212 = vld [vmem:[%s205 + $0x30] sm:$0xff]
    %v213 = vld [vmem:[%s205 + $0x38] sm:$0xff]
    %v214 = vld [vmem:[%s205 + $0x40] sm:$0xff]
    %v215 = vld [vmem:[%s205 + $0x48] sm:$0xff]
    %v216 = vld [vmem:[%s205 + $0x50] sm:$0xff]
    %v217 = vld [vmem:[%s205 + $0x58] sm:$0xff]
    %v218 = vld [vmem:[%s205 + $0x60] sm:$0xff]
    %v219 = vld [vmem:[%s205 + $0x68] sm:$0xff]
    %v220 = vld [vmem:[%s205 + $0x70] sm:$0xff]
    %v221 = vld [vmem:[%s205 + $0x78] sm:$0xff]
    %222 = vmatprep.subr.mxu0 0.0
    %223 = vmatpush1.msra.mxu0 %v221
    %224 = vmatprep.subr.mxu0 0.0
    %225 = vmatpush1.msra.mxu0 %v220
    %226 = vmatprep.subr.mxu0 0.0
    %227 = vmatpush1.msra.mxu0 %v219
    %228 = vmatprep.subr.mxu0 0.0
    %229 = vmatpush1.msra.mxu0 %v218
    %230 = vmatprep.subr.mxu0 0.0
    %231 = vmatpush1.msra.mxu0 %v217
    %232 = vmatprep.subr.mxu0 0.0
    %233 = vmatpush1.msra.mxu0 %v216
    %234 = vmatprep.subr.mxu0 0.0
    %235 = vmatpush1.msra.mxu0 %v215
    %236 = vmatprep.subr.mxu0 0.0
    %237 = vmatpush1.msra.mxu0 %v214
    %238 = vmatprep.subr.mxu0 0.0
    %239 = vmatpush1.msra.mxu0 %v213
    %240 = vmatprep.subr.mxu0 0.0
    %241 = vmatpush1.msra.mxu0 %v212
    %242 = vmatprep.subr.mxu0 0.0
    %243 = vmatpush1.msra.mxu0 %v211
    %244 = vmatprep.subr.mxu0 0.0
    %245 = vmatpush1.msra.mxu0 %v210
    %246 = vmatprep.subr.mxu0 0.0
    %247 = vmatpush1.msra.mxu0 %v209
    %248 = vmatprep.subr.mxu0 0.0
    %249 = vmatpush1.msra.mxu0 %v208
    %250 = vmatprep.subr.mxu0 0.0
    %251 = vmatpush1.msra.mxu0 %v207
    %252 = vmatprep.subr.mxu0 0.0
    %253 = vmatpush1.msra.mxu0 %v206
    %254 = vmatprep.subr.mxu0 0.0
    %255 = vmatpush2.msra.mxu0 0.0
    %256 = vmatprep.subr.mxu0 0.0
    %257 = vmatpush2.msra.mxu0 0.0
    %258 = vmatprep.subr.mxu0 0.0
    %259 = vmatpush2.msra.mxu0 0.0
    %260 = vmatprep.subr.mxu0 0.0
    %261 = vmatpush2.msra.mxu0 0.0
    %262 = vmatprep.subr.mxu0 0.0
    %263 = vmatpush2.msra.mxu0 0.0
    %264 = vmatprep.subr.mxu0 0.0
    %265 = vmatpush2.msra.mxu0 0.0
    %266 = vmatprep.subr.mxu0 0.0
    %267 = vmatpush2.msra.mxu0 0.0
    %268 = vmatprep.subr.mxu0 0.0
    %269 = vmatpush2.msra.mxu0 0.0
    %270 = vmatprep.subr.mxu0 0.0
    %271 = vmatpush2.msra.mxu0 0.0
    %272 = vmatprep.subr.mxu0 0.0
    %273 = vmatpush2.msra.mxu0 0.0
    %274 = vmatprep.subr.mxu0 0.0
    %275 = vmatpush2.msra.mxu0 0.0
    %276 = vmatprep.subr.mxu0 0.0
    %277 = vmatpush2.msra.mxu0 0.0
    %278 = vmatprep.subr.mxu0 0.0
    %279 = vmatpush2.msra.mxu0 0.0
    %280 = vmatprep.subr.mxu0 0.0
    %281 = vmatpush2.msra.mxu0 0.0
    %282 = vmatprep.subr.mxu0 0.0
    %283 = vmatpush2.msra.mxu0 0.0
    %284 = vmatprep.subr.mxu0 0.0
    %285 = vmatpush2.msra.mxu0 0.0
    %286 = vmatprep.mubr.f32.mxu0 0.0
    %287 = vmatmul.mubr.f32.gmra.mxu0 %v204
    %v288 = vpop.f32.mrf.mxu0
    %v289 = vadd.f32 0.0, %v288
    %v290 = vpop.f32.mrf.mxu0
    %291 = vdwg.mxu0
    %v292 = vmax.f32 %v289, 0.0
    %s293 = scalar_lea.vmem [#allocation2], 384
    %v294 = vld [vmem:[%s293] sm:$0xff]
    %v295 = vld [vmem:[%s293 + $0x8] sm:$0xff]
    %v296 = vld [vmem:[%s293 + $0x10] sm:$0xff]
    %v297 = vld [vmem:[%s293 + $0x18] sm:$0xff]
    %v298 = vld [vmem:[%s293 + $0x20] sm:$0xff]
    %v299 = vld [vmem:[%s293 + $0x28] sm:$0xff]
    %v300 = vld [vmem:[%s293 + $0x30] sm:$0xff]
    %v301 = vld [vmem:[%s293 + $0x38] sm:$0xff]
    %v302 = vld [vmem:[%s293 + $0x40] sm:$0xff]
    %v303 = vld [vmem:[%s293 + $0x48] sm:$0xff]
    %v304 = vld [vmem:[%s293 + $0x50] sm:$0xff]
    %v305 = vld [vmem:[%s293 + $0x58] sm:$0xff]
    %v306 = vld [vmem:[%s293 + $0x60] sm:$0xff]
    %v307 = vld [vmem:[%s293 + $0x68] sm:$0xff]
    %v308 = vld [vmem:[%s293 + $0x70] sm:$0xff]
    %v309 = vld [vmem:[%s293 + $0x78] sm:$0xff]
    %310 = vmatprep.subr.mxu0 0.0
    %311 = vmatpush1.msra.mxu0 %v309
    %312 = vmatprep.subr.mxu0 0.0
    %313 = vmatpush1.msra.mxu0 %v308
    %314 = vmatprep.subr.mxu0 0.0
    %315 = vmatpush1.msra.mxu0 %v307
    %316 = vmatprep.subr.mxu0 0.0
    %317 = vmatpush1.msra.mxu0 %v306
    %318 = vmatprep.subr.mxu0 0.0
    %319 = vmatpush1.msra.mxu0 %v305
    %320 = vmatprep.subr.mxu0 0.0
    %321 = vmatpush1.msra.mxu0 %v304
    %322 = vmatprep.subr.mxu0 0.0
    %323 = vmatpush1.msra.mxu0 %v303
    %324 = vmatprep.subr.mxu0 0.0
    %325 = vmatpush1.msra.mxu0 %v302
    %326 = vmatprep.subr.mxu0 0.0
    %327 = vmatpush1.msra.mxu0 %v301
    %328 = vmatprep.subr.mxu0 0.0
    %329 = vmatpush1.msra.mxu0 %v300
    %330 = vmatprep.subr.mxu0 0.0
    %331 = vmatpush1.msra.mxu0 %v299
    %332 = vmatprep.subr.mxu0 0.0
    %333 = vmatpush1.msra.mxu0 %v298
    %334 = vmatprep.subr.mxu0 0.0
    %335 = vmatpush1.msra.mxu0 %v297
    %336 = vmatprep.subr.mxu0 0.0
    %337 = vmatpush1.msra.mxu0 %v296
    %338 = vmatprep.subr.mxu0 0.0
    %339 = vmatpush1.msra.mxu0 %v295
    %340 = vmatprep.subr.mxu0 0.0
    %341 = vmatpush1.msra.mxu0 %v294
    %342 = vmatprep.subr.mxu0 0.0
    %343 = vmatpush2.msra.mxu0 0.0
    %344 = vmatprep.subr.mxu0 0.0
    %345 = vmatpush2.msra.mxu0 0.0
    %346 = vmatprep.subr.mxu0 0.0
    %347 = vmatpush2.msra.mxu0 0.0
    %348 = vmatprep.subr.mxu0 0.0
    %349 = vmatpush2.msra.mxu0 0.0
    %350 = vmatprep.subr.mxu0 0.0
    %351 = vmatpush2.msra.mxu0 0.0
    %352 = vmatprep.subr.mxu0 0.0
    %353 = vmatpush2.msra.mxu0 0.0
    %354 = vmatprep.subr.mxu0 0.0
    %355 = vmatpush2.msra.mxu0 0.0
    %356 = vmatprep.subr.mxu0 0.0
    %357 = vmatpush2.msra.mxu0 0.0
    %358 = vmatprep.subr.mxu0 0.0
    %359 = vmatpush2.msra.mxu0 0.0
    %360 = vmatprep.subr.mxu0 0.0
    %361 = vmatpush2.msra.mxu0 0.0
    %362 = vmatprep.subr.mxu0 0.0
    %363 = vmatpush2.msra.mxu0 0.0
    %364 = vmatprep.subr.mxu0 0.0
    %365 = vmatpush2.msra.mxu0 0.0
    %366 = vmatprep.subr.mxu0 0.0
    %367 = vmatpush2.msra.mxu0 0.0
    %368 = vmatprep.subr.mxu0 0.0
    %369 = vmatpush2.msra.mxu0 0.0
    %370 = vmatprep.subr.mxu0 0.0
    %371 = vmatpush2.msra.mxu0 0.0
    %372 = vmatprep.subr.mxu0 0.0
    %373 = vmatpush2.msra.mxu0 0.0
    %374 = vmatprep.mubr.f32.mxu0 0.0
    %375 = vmatmul.mubr.f32.gmra.mxu0 %v292
    %v376 = vpop.f32.mrf.mxu0
    %v377 = vadd.f32 0.0, %v376
    %v378 = vpop.f32.mrf.mxu0
    %379 = vdwg.mxu0
    %vm380 = vcmp.lt.s32.totalorder %v27, 2
    %v381 = vsel %vm380, %v377, -inf
    %382 = vmax.xlane.f32.xlu0 %v381
    %v383 = vpop.xlane.xlu0 %382
    %v384 = vsub.f32 %v381, %v383
    %v385 = vmul.f32 %v384, 1.442695
    %v386 = vpow.pop %v385
    %387 = vadd.xlane.f32.xlu0 %v386
    %v388 = vpop.xlane.xlu0 %387
    %v389 = vrcp.pop %v388
    %v390 = vmul.f32 %v386, %v389
    %v391 = vsel %vm380, %v390, %v377
    %392 = vst [vmem:[%s2] sm:$0xff] %v391
    // Predicated region
    $region14: #{a3c_forward.1} parent=1 // pred_check
      _
    $region15: #{a3c_forward.1} parent=1 // pred_check_branch
      %394 = sbr.rel (0) target = $region17
    $region16: #{a3c_forward.1} parent=1 // pred_region
      _
    $region17: #{a3c_forward.1} parent=1 // pred_fallthru
      _
    // Predicated region
    $region18: #{a3c_forward.1} parent=1 // pred_check
      _
    $region19: #{a3c_forward.1} parent=1 // pred_check_branch
      %396 = sbr.rel (0) target = $region21
    $region20: #{a3c_forward.1} parent=1 // pred_region
      _
    $region21: #{a3c_forward.1} parent=1 // pred_fallthru
      _
    %397 = vsyncpa [#allocation3], 1

</llo_original>
